<compile_context>
chip_gen: v6e
topology: v6e:2x2x1
jax: 0.10.0
libtpu: 0.0.40
codegen_flags: <defaults>
</compile_context>

<pallas_src>
import jax
import jax.numpy as jnp
from jax.experimental import pallas as pl
from jax.experimental.pallas import tpu as pltpu


def _se_conv1x1_kernel(gate_ref, w_ref, x_ref, o_ref, wg_ref):
    # gate_ref: (1, Cin)   w_ref: (Cout, Cin)   x_ref: (Cin, tm)
    # o_ref:   (Cout, tm)  wg_ref: VMEM scratch (Cout, Cin), f32
    @pl.when(pl.program_id(2) == 0)
    def _fold_gate():
        # Fold the SE gate into the weight once per (batch, split).  The inner
        # "arbitrary" axis reuses the resident folded weight for every j tile.
        wg_ref[...] = w_ref[...] * jax.nn.sigmoid(gate_ref[...])

    o_ref[...] = jnp.dot(
        wg_ref[...], x_ref[...], preferred_element_type=jnp.float32
    ).astype(o_ref.dtype)


def _round_up(x, m):
    return -(-x // m) * m


def _plan_spatial(M, *, max_tm=4096, want_splits=2):
    """Pick (Mp, S, tm, J): padded spatial extent, parallel splits, lane tile, inner blocks.

    Invariants: Mp = S * J * tm, tm is a multiple of 128, tm <= max_tm.
    """
    lane = 128
    blocks = _round_up(M, lane) // lane           # 128-lane blocks after padding
    S = want_splits if blocks >= want_splits else 1
    blocks = _round_up(blocks, S)                 # pad so the splits are even
    per_split = blocks // S                       # blocks per parallel split
    cap = max_tm // lane
    # Largest divisor of per_split that fits the tm cap (falls back to 1 -> tm = 128).
    tm_blocks = max(t for t in range(1, min(per_split, cap) + 1) if per_split % t == 0)
    tm = tm_blocks * lane
    J = per_split // tm_blocks
    Mp = S * J * tm
    return Mp, S, tm, J


def se_conv1x1(gate_nc11, x_nchw, weight_oi11):
    """out = Conv2d_1x1(sigmoid(gate) * x), no bias.  NCHW in / NCHW out."""
    N, Cin, H, W = x_nchw.shape
    Cout = weight_oi11.shape[0]
    M = H * W

    Mp, S, tm, J = _plan_spatial(M)

    # Layout-free reshapes (no data movement).
    x = x_nchw.reshape(N, Cin, M)
    gate = gate_nc11.reshape(N, Cin)
    w = weight_oi11.reshape(Cout, Cin)

    if Mp != M:
        # Zero-pad the spatial dim to a lane-dense multiple of 128*S so the output
        # BlockSpec stays unmasked (vst, not vst.msk).  Padded columns stay zero and
        # are sliced off below.
        x = jnp.pad(x, ((0, 0), (0, 0), (0, Mp - M)))

    itemsize = jnp.dtype(x_nchw.dtype).itemsize
    cost = pl.CostEstimate(
        flops=2 * N * Mp * Cin * Cout,
        transcendentals=N * S * Cin,
        bytes_accessed=(N * Cin * Mp + gate.size + w.size + N * Cout * Mp) * itemsize,
    )

    out = pl.pallas_call(
        _se_conv1x1_kernel,
        out_shape=jax.ShapeDtypeStruct((N, Cout, Mp), x_nchw.dtype),
        grid_spec=pltpu.PrefetchScalarGridSpec(
            num_scalar_prefetch=0,
            grid=(N, S, J),
            in_specs=[
                pl.BlockSpec((1, Cin), lambda n, s, j: (n, 0)),                    # gate
                pl.BlockSpec((Cout, Cin), lambda n, s, j: (0, 0)),                 # weight
                pl.BlockSpec((None, Cin, tm), lambda n, s, j: (n, 0, s * J + j)),  # x cols
            ],
            out_specs=pl.BlockSpec((None, Cout, tm), lambda n, s, j: (n, 0, s * J + j)),
            scratch_shapes=[pltpu.VMEM((Cout, Cin), jnp.float32)],
        ),
        compiler_params=pltpu.CompilerParams(
            dimension_semantics=("parallel", "parallel", "arbitrary"),
        ),
        cost_estimate=cost,
    )(gate, w, x)

    if Mp != M:
        out = out[:, :, :M]
    return out.reshape(N, Cout, H, W)


def reference(gate_nc11, x_nchw, weight_oi11):
    scale = jax.nn.sigmoid(gate_nc11)                         # (N, Cin, 1, 1)
    xs = scale * x_nchw                                       # (N, Cin, H, W)
    w = weight_oi11.reshape(weight_oi11.shape[0], weight_oi11.shape[1])
    return jnp.einsum("oc,nchw->nohw", w, xs)


if __name__ == "__main__":
    key = jax.random.PRNGKey(0)
    k1, k2, k3 = jax.random.split(key, 3)

    # Shapes consistent with the module: Conv2d(288 -> 48, 1x1), SE gate, small spatial.
    N, Cin, Cout = 1, 288, 48

    bound = 1.0 / (Cin ** 0.5)
    weight = jax.random.uniform(
        k3, (Cout, Cin, 1, 1), minval=-bound, maxval=bound, dtype=jnp.float32
    )
    x157 = jax.random.normal(k2, (N, Cin, 1, 1), dtype=jnp.float32)   # SE gate logits

    # Primary small shape: 16x16 (M = 256, lane-dense, exercises the parallel split).
    H = W = 16
    x153 = jax.random.normal(k1, (N, Cin, H, W), dtype=jnp.float32)
    out = jax.block_until_ready(se_conv1x1(x157, x153, weight))
    ref = reference(x157, x153, weight)
    assert out.shape == (N, Cout, H, W), out.shape
    assert jnp.allclose(out, ref, atol=1e-4, rtol=1e-4), "mismatch vs reference (16x16)"

    # Padding path: 14x14 (M = 196, not a multiple of 128 -> zero-pad + slice).
    Hp = Wp = 14
    x153p = jax.random.normal(k1, (N, Cin, Hp, Wp), dtype=jnp.float32)
    outp = jax.block_until_ready(se_conv1x1(x157, x153p, weight))
    refp = reference(x157, x153p, weight)
    assert outp.shape == (N, Cout, Hp, Wp), outp.shape
    assert jnp.allclose(outp, refp, atol=1e-4, rtol=1e-4), "mismatch vs reference (14x14)"

    print("KERNEL_OK")
</pallas_src>

<mosaic_0001>
module attributes {stable_mosaic.version = 11 : i64} {
  func.func @_se_conv1x1_kernel(%arg0: i32, %arg1: i32, %arg2: i32, %arg3: memref<1x288xf32, #tpu.memory_space<vmem>>, %arg4: memref<48x288xf32, #tpu.memory_space<vmem>>, %arg5: memref<1x288x128xf32, #tpu.memory_space<vmem>>, %arg6: memref<1x48x128xf32, #tpu.memory_space<vmem>>, %arg7: memref<48x288xf32, #tpu.memory_space<vmem>>) attributes {dimension_semantics = [#tpu.dimension_semantics<parallel>, #tpu.dimension_semantics<parallel>, #tpu.dimension_semantics<arbitrary>], iteration_bounds = array<i64: 1, 2, 1>, scalar_prefetch = 0 : i64, scratch_operands = 1 : i64, tpu.core_type = #tpu.core_type<tc>, window_params = [{transform_indices = @transform_0, window_bounds = array<i64: 1, 288>}, {pipeline_mode = #tpu.pipeline_mode<synchronous>, transform_indices = @transform_1, window_bounds = array<i64: 48, 288>}, {transform_indices = @transform_2, window_bounds = array<i64: 1, 288, 128>}, {transform_indices = @transform_3, window_bounds = array<i64: 1, 48, 128>}]} {
    %c0_i32 = arith.constant 0 : i32
    %0 = arith.cmpi eq, %arg2, %c0_i32 : i32
    %1 = arith.extui %0 : i1 to i32
    %c0_i32_0 = arith.constant 0 : i32
    %2 = arith.cmpi ne, %1, %c0_i32_0 : i32
    scf.if %2 {
      %c0_8 = arith.constant 0 : index
      %c0_9 = arith.constant 0 : index
      %10 = vector.load %arg4[%c0_8, %c0_9] : memref<48x288xf32, #tpu.memory_space<vmem>>, vector<48x288xf32>
      %c0_10 = arith.constant 0 : index
      %c0_11 = arith.constant 0 : index
      %11 = vector.load %arg3[%c0_10, %c0_11] : memref<1x288xf32, #tpu.memory_space<vmem>>, vector<1x288xf32>
      %12 = arith.negf %11 : vector<1x288xf32>
      %13 = math.exp %12 : vector<1x288xf32>
      %cst_12 = arith.constant 1.000000e+00 : f32
      %14 = vector.broadcast %cst_12 : f32 to vector<1x288xf32>
      %15 = arith.addf %14, %13 : vector<1x288xf32>
      %16 = arith.divf %14, %15 : vector<1x288xf32>
      %17 = vector.broadcast %16 : vector<1x288xf32> to vector<48x288xf32>
      %18 = arith.mulf %10, %17 : vector<48x288xf32>
      %c0_13 = arith.constant 0 : index
      %c0_14 = arith.constant 0 : index
      %19 = vector.load %arg7[%c0_13, %c0_14] : memref<48x288xf32, #tpu.memory_space<vmem>>, vector<48x288xf32>
      tpu.vector_store %arg7[%c0_13, %c0_14], %18 {strides = array<i32>} : memref<48x288xf32, #tpu.memory_space<vmem>>, vector<48x288xf32>,
    } else {
    }
    %c0 = arith.constant 0 : index
    %c0_1 = arith.constant 0 : index
    %3 = vector.load %arg7[%c0, %c0_1] : memref<48x288xf32, #tpu.memory_space<vmem>>, vector<48x288xf32>
    %c0_2 = arith.constant 0 : index
    %c0_3 = arith.constant 0 : index
    %c0_4 = arith.constant 0 : index
    %4 = vector.load %arg5[%c0_2, %c0_3, %c0_4] : memref<1x288x128xf32, #tpu.memory_space<vmem>>, vector<1x288x128xf32>
    %5 = vector.shape_cast %4 : vector<1x288x128xf32> to vector<288x128xf32>
    %cst = arith.constant dense<0.000000e+00> : vector<48x128xf32>
    %6 = tpu.matmul %3, %5, %cst {dimension_numbers = #tpu.dot_dimension_numbers<[1], [0], [0], [1], [0, 0, 1, 1], [], []>} : vector<48x288xf32>, vector<288x128xf32>, vector<48x128xf32> -> vector<48x128xf32>
    %c0_5 = arith.constant 0 : index
    %c0_6 = arith.constant 0 : index
    %c0_7 = arith.constant 0 : index
    %7 = vector.load %arg6[%c0_5, %c0_6, %c0_7] : memref<1x48x128xf32, #tpu.memory_space<vmem>>, vector<1x48x128xf32>
    %8 = vector.shape_cast %7 : vector<1x48x128xf32> to vector<48x128xf32>
    %9 = vector.shape_cast %6 : vector<48x128xf32> to vector<1x48x128xf32>
    tpu.vector_store %arg6[%c0_5, %c0_6, %c0_7], %9 {strides = array<i32>} : memref<1x48x128xf32, #tpu.memory_space<vmem>>, vector<1x48x128xf32>,
    return
  }
  func.func @transform_0(%arg0: i32, %arg1: i32, %arg2: i32) -> (i32, i32) {
    %c0_i32 = arith.constant 0 : i32
    %c0_i32_0 = arith.constant 0 : i32
    return %arg0, %c0_i32 : i32, i32
  }
  func.func @transform_1(%arg0: i32, %arg1: i32, %arg2: i32) -> (i32, i32) {
    %c0_i32 = arith.constant 0 : i32
    %c0_i32_0 = arith.constant 0 : i32
    %c0_i32_1 = arith.constant 0 : i32
    return %c0_i32, %c0_i32_0 : i32, i32
  }
  func.func @transform_2(%arg0: i32, %arg1: i32, %arg2: i32) -> (i32, i32, i32) {
    %c1_i32 = arith.constant 1 : i32
    %0 = arith.muli %arg1, %c1_i32 : i32
    %1 = arith.addi %0, %arg2 : i32
    %c0_i32 = arith.constant 0 : i32
    %c0_i32_0 = arith.constant 0 : i32
    return %arg0, %c0_i32, %1 : i32, i32, i32
  }
  func.func @transform_3(%arg0: i32, %arg1: i32, %arg2: i32) -> (i32, i32, i32) {
    %c1_i32 = arith.constant 1 : i32
    %0 = arith.muli %arg1, %c1_i32 : i32
    %1 = arith.addi %0, %arg2 : i32
    %c0_i32 = arith.constant 0 : i32
    %c0_i32_0 = arith.constant 0 : i32
    return %arg0, %c0_i32, %1 : i32, i32, i32
  }
}

</mosaic_0001>

<llo_original>
// kernel: tpu_custom_call.1
$region0: #{tpu_custom_call.1}
  #allocation0 [shape = 'u32[]', space=smem, size = 0x4, offset = 0x4, fixed_abs, tag = 'smem constant byte address 0x4 - core index']
  #allocation1 [shape = 'u32[144,128]{1,0:T(1,128)}', space=vmem, size = 0x12000, scoped, tag = 'internal scratch']
  #allocation2 [shape = 'f32[48,288]{1,0:T(8,128)}', space=vmem, size = 0x12000, scoped, tag = 'scratch operand']
  %s0 = inlined_call_operand.hbm [shape: f32[1,288], index: 0, kind: input, shape index: {}]
  %s1 = inlined_call_operand.hbm [shape: f32[48,288], index: 1, kind: input, shape index: {}]
  %s2 = inlined_call_operand.hbm [shape: f32[1,288,256], index: 2, kind: input, shape index: {}]
  %s3 = inlined_call_operand.hbm [shape: f32[1,48,256], index: 3, kind: output, shape index: {}]
  %s4 = sld [smem:[#allocation0]]
  $region61: #{tpu_custom_call.1} parent=0
    _
  %s6 = ssub.s32 1, %s4
  %s7 = scalar_select 0, %s6, %s4
  $region1: #{tpu_custom_call.1} parent=0
    #allocation3 [shape = 'u8[1536]{0}', space=vmem, size = 0x800, scoped, tag = 'input window, operand 0, single buffered']
    #allocation4 [shape = 's32[2]{0}', space=sflag, size = 0x8, scoped, tag = 'scoped memory for tpu_custom_call.1']
    #allocation5 [shape = 's32[2]{0}', space=sflag, size = 0x8, scoped, tag = 'scoped memory for tpu_custom_call.1']
    #allocation6 [shape = 'u8[73728]{0}', space=vmem, size = 0x12000, scoped, tag = 'input window, operand 1, single buffered']
    #allocation7 [shape = 's32[1]{0}', space=sflag, size = 0x4, scoped, tag = 'scoped memory for tpu_custom_call.1']
    #allocation8 [shape = 'u8[294912]{0}', space=vmem, size = 0x48000, scoped, tag = 'input window, operand 2']
    #allocation9 [shape = 'u8[49152]{0}', space=vmem, size = 0xc000, scoped, tag = 'output window, operand 0']
    %8 = vsyncpa [#allocation4], 0
    %9 = vsyncpa [#allocation7], 0
    %10 = vsyncpa [#allocation5], 0
    %s11 = scalar_lea.sflag [#allocation5], 1
    %12 = vsyncpa %s11, 0
    loop: start=0, step=1, limit=4
    $region2: #{tpu_custom_call.1} parent=1 // loop_pre_header
      _
    $region3: #{tpu_custom_call.1} parent=1 // loop_header
      %s14 = sphi 0, %s18
      %p15 = scmp.ge.s32.totalorder %s14, 4
      %s21 = sphi 0, %s40
      %s22 = sphi 0, %s36
      %s23 = sphi 0, %s32
      %s24 = sphi 0, %s21
      %s25 = sphi 0, %s22
      %s26 = sphi 0, %s23
      %s27 = sphi 0, %s24
      %s28 = sphi 0, %s25
      %s29 = sphi 0, %s26
      %s43 = sphi 0, %s45
      %s46 = sphi 0, %s43
      %s47 = sphi 0, %s46
      %s63 = sphi 0, %s47
      %s67 = sphi 0, %s67
      %s69 = sphi 0, %s67
      %s70 = sphi 0, %s69
      %s84 = sphi 0, %s70
      %s94 = sphi 0, %s96
      %s97 = sphi 0, %s94
      %s98 = sphi 0, %s97
      %s114 = sphi 0, %s98
      %s124 = sphi 0, %s126
      %s127 = sphi 0, %s124
      %s128 = sphi 0, %s127
      %s144 = sphi 0, %s128
    $region4: #{tpu_custom_call.1} parent=1 // loop_header_branch
      %17 = sbr.rel (%p15) target = $region8
    $region5: #{tpu_custom_call.1} parent=1 // loop_body
      %s19 = ssub.s32 %s14, 1
      %s20 = ssub.s32 %s14, 2
      %s30 = sadd.s32 1, %s23
      %p31 = scmp.ge.s32.totalorder %s30, 1
      %s32 = scalar_select %p31, 0, %s30
      %s33 = sadd.s32 1, %s22
      %s34 = scalar_select %p31, %s33, %s22
      %p35 = scmp.ge.s32.totalorder %s34, 2
      %s36 = scalar_select %p35, 0, %s34
      %s37 = sadd.s32 1, %s21
      %s38 = scalar_select %p35, %s37, %s21
      %p39 = scmp.ge.s32.totalorder %s38, 1
      %s40 = scalar_select %p39, 0, %s38
      %s41 = ssub.s32 %s21, %s40
      %p42 = scmp.eq.s32.totalorder %s41, 0
      %s44 = sadd.s32 %s43, 1
      %s45 = scalar_select %p42, %s43, %s44
      %p48 = pneg %p42
      %p49 = scmp.eq.s32.totalorder %s14, 1
      %p50 = por %p48, %p49
      %p51 = scmp.ne.s32.totalorder %s43, %s46
      %p52 = scmp.eq.s32.totalorder %s14, 0
      %p53 = por %p51, %p52
      %p54 = scmp.ne.s32.totalorder %s43, %s46
      %p55 = scmp.eq.s32.totalorder %s19, 1
      %p56 = por %p54, %p55
      %p57 = scmp.ne.s32.totalorder %s46, %s47
      %p58 = scmp.eq.s32.totalorder %s19, 0
      %p59 = por %p57, %p58
      %p60 = scmp.ne.s32.totalorder %s46, %s47
      %p61 = scmp.eq.s32.totalorder %s20, 1
      %p62 = por %p60, %p61
      %p64 = scmp.ne.s32.totalorder %s47, %s63
      %p65 = scmp.eq.s32.totalorder %s20, 0
      %p66 = por %p64, %p65
      %s68 = sadd.s32 %s67, 1
      %p71 = scmp.eq.s32.totalorder %s14, 1
      %p72 = scmp.ne.s32.totalorder %s67, %s69
      %p73 = scmp.eq.s32.totalorder %s14, 0
      %p74 = por %p72, %p73
      %p75 = scmp.ne.s32.totalorder %s67, %s69
      %p76 = scmp.eq.s32.totalorder %s19, 1
      %p77 = por %p75, %p76
      %p78 = scmp.ne.s32.totalorder %s69, %s70
      %p79 = scmp.eq.s32.totalorder %s19, 0
      %p80 = por %p78, %p79
      %p81 = scmp.ne.s32.totalorder %s69, %s70
      %p82 = scmp.eq.s32.totalorder %s20, 1
      %p83 = por %p81, %p82
      %p85 = scmp.ne.s32.totalorder %s70, %s84
      %p86 = scmp.eq.s32.totalorder %s20, 0
      %p87 = por %p85, %p86
      %s88 = sadd.s32 %s22, %s23
      %s89 = sadd.s32 %s36, %s32
      %s90 = ssub.s32 %s21, %s40
      %s91 = ssub.s32 %s88, %s89
      %s92 = sor.u32 %s90, %s91
      %p93 = scmp.eq.s32.totalorder %s92, 0
      %s95 = sadd.s32 %s94, 1
      %s96 = scalar_select %p93, %s94, %s95
      %p99 = pneg %p93
      %p100 = scmp.eq.s32.totalorder %s14, 1
      %p101 = por %p99, %p100
      %p102 = scmp.ne.s32.totalorder %s94, %s97
      %p103 = scmp.eq.s32.totalorder %s14, 0
      %p104 = por %p102, %p103
      %p105 = scmp.ne.s32.totalorder %s94, %s97
      %p106 = scmp.eq.s32.totalorder %s19, 1
      %p107 = por %p105, %p106
      %p108 = scmp.ne.s32.totalorder %s97, %s98
      %p109 = scmp.eq.s32.totalorder %s19, 0
      %p110 = por %p108, %p109
      %p111 = scmp.ne.s32.totalorder %s97, %s98
      %p112 = scmp.eq.s32.totalorder %s20, 1
      %p113 = por %p111, %p112
      %p115 = scmp.ne.s32.totalorder %s98, %s114
      %p116 = scmp.eq.s32.totalorder %s20, 0
      %p117 = por %p115, %p116
      %s118 = sadd.s32 %s22, %s23
      %s119 = sadd.s32 %s36, %s32
      %s120 = ssub.s32 %s21, %s40
      %s121 = ssub.s32 %s118, %s119
      %s122 = sor.u32 %s120, %s121
      %p123 = scmp.eq.s32.totalorder %s122, 0
      %s125 = sadd.s32 %s124, 1
      %s126 = scalar_select %p123, %s124, %s125
      %p129 = pneg %p123
      %p130 = scmp.eq.s32.totalorder %s14, 1
      %p131 = por %p129, %p130
      %p132 = scmp.ne.s32.totalorder %s124, %s127
      %p133 = scmp.eq.s32.totalorder %s14, 0
      %p134 = por %p132, %p133
      %p135 = scmp.ne.s32.totalorder %s124, %s127
      %p136 = scmp.eq.s32.totalorder %s19, 1
      %p137 = por %p135, %p136
      %p138 = scmp.ne.s32.totalorder %s127, %s128
      %p139 = scmp.eq.s32.totalorder %s19, 0
      %p140 = por %p138, %p139
      %p141 = scmp.ne.s32.totalorder %s127, %s128
      %p142 = scmp.eq.s32.totalorder %s20, 1
      %p143 = por %p141, %p142
      %p145 = scmp.ne.s32.totalorder %s128, %s144
      %p146 = scmp.eq.s32.totalorder %s20, 0
      %p147 = por %p145, %p146
      %p148 = scmp.le.s32.totalorder 1, %s14
      %p149 = scmp.lt.s32.totalorder %s14, 3
      %p150 = pnand %p148, %p149
      %p151 = pneg %p150
      // Predicated region
      $region9: #{tpu_custom_call.1} parent=5 // pred_check
        _
      $region10: #{tpu_custom_call.1} parent=5 // pred_check_branch
        %153 = sbr.rel (%p150) target = $region12
      $region11: #{tpu_custom_call.1} parent=5 // pred_region
        %s154 = ssub.s32 %s14, 1
        // Predicated region
        $region13: #{tpu_custom_call.1} parent=11 // pred_check
          %p155 = pneg %p59
        $region14: #{tpu_custom_call.1} parent=11 // pred_check_branch
          %157 = sbr.rel (%p155) target = $region16
        $region15: #{tpu_custom_call.1} parent=11 // pred_region
          %s159 = ssub.s32 48, 48
          %160 = vsyncadd [#allocation4], %s159
          %s161 = smul.addr %s24, 3
          %s162 = smul.addr %s161, 16
          %s163 = scalar_lea.hbm %s0, %s162
          %s165 = sshll.u32 [#allocation3], 4
          %s166 = int_to_ptr.vmem [resolvable:$true] %s165
          %168 = dma.hbm_to_vmem [thread:$0]  %s163, 48, %s166, [#allocation4]
        $region16: #{tpu_custom_call.1} parent=11 // pred_fallthru
          _
        // Predicated region
        $region17: #{tpu_custom_call.1} parent=11 // pred_check
          %p169 = pneg %p80
        $region18: #{tpu_custom_call.1} parent=11 // pred_check_branch
          %171 = sbr.rel (%p169) target = $region20
        $region19: #{tpu_custom_call.1} parent=11 // pred_region
          %s173 = ssub.s32 2304, 2304
          %174 = vsyncadd [#allocation7], %s173
          %s175 = sshll.u32 [#allocation6], 4
          %s176 = int_to_ptr.vmem [resolvable:$true] %s175
          %181 = dma.hbm_to_vmem [thread:$0]  %s1, 2304, %s176, [#allocation7], 384, 384, 24
        $region20: #{tpu_custom_call.1} parent=11 // pred_fallthru
          _
      $region12: #{tpu_custom_call.1} parent=5 // pred_fallthru
        _
      %p182 = scmp.lt.s32.totalorder %s14, 2
      // Predicated region
      $region21: #{tpu_custom_call.1} parent=5 // pred_check
        %p183 = pneg %p182
      $region22: #{tpu_custom_call.1} parent=5 // pred_check_branch
        %185 = sbr.rel (%p183) target = $region24
      $region23: #{tpu_custom_call.1} parent=5 // pred_region
        // Predicated region
        $region25: #{tpu_custom_call.1} parent=23 // pred_check
          %p186 = pneg %p104
        $region26: #{tpu_custom_call.1} parent=23 // pred_check_branch
          %188 = sbr.rel (%p186) target = $region28
        $region27: #{tpu_custom_call.1} parent=23 // pred_region
          %s189 = sand.u32 %s14, 1
          %s190 = scalar_lea.sflag [#allocation4], %s189
          %s191 = sand.u32 %s94, 1
          %s192 = smul.addr %s191, 288
          %s193 = scalar_lea.vmem [#allocation8], %s192
          %s194 = sadd.s32 %s22, %s23
          %s196 = ssub.s32 4608, 4608
          %197 = vsyncadd %s190, %s196
          %s198 = smul.addr %s21, 72
          %s199 = sadd.s32 %s194, %s198
          %s200 = smul.addr %s199, 128
          %s201 = scalar_lea.hbm %s2, %s200
          %s202 = sshll.u32 %s193, 4
          %s203 = int_to_ptr.vmem [resolvable:$true] %s202
          %208 = dma.hbm_to_vmem [thread:$0]  %s201, 4608, %s203, %s190, 256, 128, 8
        $region28: #{tpu_custom_call.1} parent=23 // pred_fallthru
          _
      $region24: #{tpu_custom_call.1} parent=5 // pred_fallthru
        _
      %p209 = scmp.le.s32.totalorder 1, %s14
      %p210 = scmp.lt.s32.totalorder %s14, 3
      %p211 = pnand %p209, %p210
      %p212 = pneg %p211
      // Predicated region
      $region29: #{tpu_custom_call.1} parent=5 // pred_check
        _
      $region30: #{tpu_custom_call.1} parent=5 // pred_check_branch
        %214 = sbr.rel (%p211) target = $region32
      $region31: #{tpu_custom_call.1} parent=5 // pred_region
        %s215 = ssub.s32 %s14, 1
        // Predicated region
        $region33: #{tpu_custom_call.1} parent=31 // pred_check
          %p216 = pneg %p59
        $region34: #{tpu_custom_call.1} parent=31 // pred_check_branch
          %218 = sbr.rel (%p216) target = $region36
        $region35: #{tpu_custom_call.1} parent=31 // pred_region
          %219 = dma.done [#allocation4], 48
        $region36: #{tpu_custom_call.1} parent=31 // pred_fallthru
          _
        // Predicated region
        $region37: #{tpu_custom_call.1} parent=31 // pred_check
          %p220 = pneg %p80
        $region38: #{tpu_custom_call.1} parent=31 // pred_check_branch
          %222 = sbr.rel (%p220) target = $region40
        $region39: #{tpu_custom_call.1} parent=31 // pred_region
          %223 = dma.done [#allocation7], 2304
        $region40: #{tpu_custom_call.1} parent=31 // pred_fallthru
          _
        %s224 = sand.u32 %s19, 1
        %s225 = scalar_lea.sflag [#allocation4], %s224
        %s226 = sand.u32 %s97, 1
        %s227 = smul.addr %s226, 288
        %s228 = scalar_lea.vmem [#allocation8], %s227
        // Predicated region
        $region41: #{tpu_custom_call.1} parent=31 // pred_check
          %p229 = pneg %p110
        $region42: #{tpu_custom_call.1} parent=31 // pred_check_branch
          %231 = sbr.rel (%p229) target = $region44
        $region43: #{tpu_custom_call.1} parent=31 // pred_region
          %232 = dma.done %s225, 4608
        $region44: #{tpu_custom_call.1} parent=31 // pred_fallthru
          _
        %p233 = pneg %p59
        %p234 = pneg %p56
        %p235 = pneg %p80
        %p236 = pneg %p77
        %s237 = sand.u32 %s19, 1
        %s238 = scalar_lea.sflag [#allocation4], %s237
        %s239 = sand.u32 %s97, 1
        %s240 = smul.addr %s239, 288
        %s241 = scalar_lea.vmem [#allocation8], %s240
        %p242 = pneg %p110
        %p243 = pneg %p107
        %p244 = pneg %p140
        %p245 = pneg %p137
        %s246 = sand.u32 %s127, 1
        %s247 = scalar_lea.sflag [#allocation5], %s246
        %s248 = sand.u32 %s127, 1
        %s249 = smul.addr %s248, 48
        %s250 = scalar_lea.vmem [#allocation9], %s249
        %s251 = sadd.s32 %s25, %s26
        %s252 = sadd.s32 %s25, %s26
        %p253 = scmp.eq.s32.totalorder %s26, 0
        // Predicated region
        $region45: #{tpu_custom_call.1} parent=31 // pred_check
          %p254 = pneg %p253
        $region46: #{tpu_custom_call.1} parent=31 // pred_check_branch
          %256 = sbr.rel (%p254) target = $region48
        $region47: #{tpu_custom_call.1} parent=31 // pred_region
          %v257 = vld [vmem:[#allocation6] sm:$0xff]
          %v258 = vld [vmem:[#allocation6 + $0x8] sm:$0xff]
          %v259 = vld [vmem:[#allocation6 + $0x10] sm:$0xff]
          %v260 = vld [vmem:[#allocation6 + $0x18] sm:$0xff]
          %v261 = vld [vmem:[#allocation6 + $0x20] sm:$0xff]
          %v262 = vld [vmem:[#allocation6 + $0x28] sm:$0xff]
          %v263 = vld [vmem:[#allocation6 + $0x30] sm:$0xff]
          %v264 = vld [vmem:[#allocation6 + $0x38] sm:$0xff]
          %v265 = vld [vmem:[#allocation6 + $0x40] sm:$0xff]
          %v266 = vld [vmem:[#allocation6 + $0x48] sm:$0xff]
          %v267 = vld [vmem:[#allocation6 + $0x50] sm:$0xff]
          %v268 = vld [vmem:[#allocation6 + $0x58] sm:$0xff]
          %v269 = vld [vmem:[#allocation6 + $0x60] sm:$0xff]
          %v270 = vld [vmem:[#allocation6 + $0x68] sm:$0xff]
          %v271 = vld [vmem:[#allocation6 + $0x70] sm:$0xff]
          %v272 = vld [vmem:[#allocation6 + $0x78] sm:$0xff]
          %v273 = vld [vmem:[#allocation6 + $0x80] sm:$0xff]
          %v274 = vld [vmem:[#allocation6 + $0x88] sm:$0xff]
          %v275 = vld [vmem:[#allocation3] sm:$0x7]
          %v276 = vxor.u32 %v275, 2147483648
          %v277 = vmul.f32 %v276, 1.442695
          %v278 = vpow.pop %v277
          %v279 = vadd.f32 %v278, 1.0
          %v280 = vrcp.pop %v279
          %v281 = vmul.f32 1.0, %v280
          %v283 = vlaneseq
          %v284 = vshrl.u32 %v283, 7
          %v285 = vsub.s32 0, %v284
          %v286 = vrot.slane %v281, %v285
          %v287 = vlaneseq
          %v288 = vshrl.u32 %v287, 7
          %v289 = vsub.s32 1, %v288
          %v290 = vrot.slane %v281, %v289
          %v291 = vlaneseq
          %v292 = vshrl.u32 %v291, 7
          %v293 = vsub.s32 2, %v292
          %v294 = vrot.slane %v281, %v293
          %v298 = vmul.f32 %v257, %v286
          %v299 = vmul.f32 %v258, %v290
          %v300 = vmul.f32 %v259, %v294
          %v301 = vmul.f32 %v260, %v286
          %v302 = vmul.f32 %v261, %v290
          %v303 = vmul.f32 %v262, %v294
          %v304 = vmul.f32 %v263, %v286
          %v305 = vmul.f32 %v264, %v290
          %v306 = vmul.f32 %v265, %v294
          %v307 = vmul.f32 %v266, %v286
          %v308 = vmul.f32 %v267, %v290
          %v309 = vmul.f32 %v268, %v294
          %v310 = vmul.f32 %v269, %v286
          %v311 = vmul.f32 %v270, %v290
          %v312 = vmul.f32 %v271, %v294
          %v313 = vmul.f32 %v272, %v286
          %v314 = vmul.f32 %v273, %v290
          %v315 = vmul.f32 %v274, %v294
          %316 = vst [vmem:[#allocation2] sm:$0xff] %v298
          %317 = vst [vmem:[#allocation2 + $0x8] sm:$0xff] %v299
          %vm318 = vcmask 261120
          %319 = vst.msk [vmem:[#allocation2 + $0x10] sm:$0xff] %vm318, %v300
          %320 = vst [vmem:[#allocation2 + $0x18] sm:$0xff] %v301
          %321 = vst [vmem:[#allocation2 + $0x20] sm:$0xff] %v302
          %322 = vst.msk [vmem:[#allocation2 + $0x28] sm:$0xff] %vm318, %v303
          %323 = vst [vmem:[#allocation2 + $0x30] sm:$0xff] %v304
          %324 = vst [vmem:[#allocation2 + $0x38] sm:$0xff] %v305
          %325 = vst.msk [vmem:[#allocation2 + $0x40] sm:$0xff] %vm318, %v306
          %326 = vst [vmem:[#allocation2 + $0x48] sm:$0xff] %v307
          %327 = vst [vmem:[#allocation2 + $0x50] sm:$0xff] %v308
          %328 = vst.msk [vmem:[#allocation2 + $0x58] sm:$0xff] %vm318, %v309
          %329 = vst [vmem:[#allocation2 + $0x60] sm:$0xff] %v310
          %330 = vst [vmem:[#allocation2 + $0x68] sm:$0xff] %v311
          %331 = vst.msk [vmem:[#allocation2 + $0x70] sm:$0xff] %vm318, %v312
          %332 = vst [vmem:[#allocation2 + $0x78] sm:$0xff] %v313
          %333 = vst [vmem:[#allocation2 + $0x80] sm:$0xff] %v314
          %334 = vst.msk [vmem:[#allocation2 + $0x88] sm:$0xff] %vm318, %v315
        $region48: #{tpu_custom_call.1} parent=31 // pred_fallthru
          _
        %v335 = vld [vmem:[#allocation2] sm:$0xff]
        %v336 = vld [vmem:[#allocation2 + $0x8] sm:$0xff]
        %v337 = vld [vmem:[#allocation2 + $0x10] sm:$0xff]
        %v338 = vld [vmem:[#allocation2 + $0x18] sm:$0xff]
        %v339 = vld [vmem:[#allocation2 + $0x20] sm:$0xff]
        %v340 = vld [vmem:[#allocation2 + $0x28] sm:$0xff]
        %v341 = vld [vmem:[#allocation2 + $0x30] sm:$0xff]
        %v342 = vld [vmem:[#allocation2 + $0x38] sm:$0xff]
        %v343 = vld [vmem:[#allocation2 + $0x40] sm:$0xff]
        %v344 = vld [vmem:[#allocation2 + $0x48] sm:$0xff]
        %v345 = vld [vmem:[#allocation2 + $0x50] sm:$0xff]
        %v346 = vld [vmem:[#allocation2 + $0x58] sm:$0xff]
        %v347 = vld [vmem:[#allocation2 + $0x60] sm:$0xff]
        %v348 = vld [vmem:[#allocation2 + $0x68] sm:$0xff]
        %v349 = vld [vmem:[#allocation2 + $0x70] sm:$0xff]
        %v350 = vld [vmem:[#allocation2 + $0x78] sm:$0xff]
        %v351 = vld [vmem:[#allocation2 + $0x80] sm:$0xff]
        %v352 = vld [vmem:[#allocation2 + $0x88] sm:$0xff]
        %v353 = vld [vmem:[%s228] sm:$0xff]
        %v354 = vld [vmem:[%s228 + $0x8] sm:$0xff]
        %v355 = vld [vmem:[%s228 + $0x10] sm:$0xff]
        %v356 = vld [vmem:[%s228 + $0x18] sm:$0xff]
        %v357 = vld [vmem:[%s228 + $0x20] sm:$0xff]
        %v358 = vld [vmem:[%s228 + $0x28] sm:$0xff]
        %v359 = vld [vmem:[%s228 + $0x30] sm:$0xff]
        %v360 = vld [vmem:[%s228 + $0x38] sm:$0xff]
        %v361 = vld [vmem:[%s228 + $0x40] sm:$0xff]
        %v362 = vld [vmem:[%s228 + $0x48] sm:$0xff]
        %v363 = vld [vmem:[%s228 + $0x50] sm:$0xff]
        %v364 = vld [vmem:[%s228 + $0x58] sm:$0xff]
        %v365 = vld [vmem:[%s228 + $0x60] sm:$0xff]
        %v366 = vld [vmem:[%s228 + $0x68] sm:$0xff]
        %v367 = vld [vmem:[%s228 + $0x70] sm:$0xff]
        %v368 = vld [vmem:[%s228 + $0x78] sm:$0xff]
        %v369 = vld [vmem:[%s228 + $0x80] sm:$0xff]
        %v370 = vld [vmem:[%s228 + $0x88] sm:$0xff]
        %v371 = vld [vmem:[%s228 + $0x90] sm:$0xff]
        %v372 = vld [vmem:[%s228 + $0x98] sm:$0xff]
        %v373 = vld [vmem:[%s228 + $0xa0] sm:$0xff]
        %v374 = vld [vmem:[%s228 + $0xa8] sm:$0xff]
        %v375 = vld [vmem:[%s228 + $0xb0] sm:$0xff]
        %v376 = vld [vmem:[%s228 + $0xb8] sm:$0xff]
        %v377 = vld [vmem:[%s228 + $0xc0] sm:$0xff]
        %v378 = vld [vmem:[%s228 + $0xc8] sm:$0xff]
        %v379 = vld [vmem:[%s228 + $0xd0] sm:$0xff]
        %v380 = vld [vmem:[%s228 + $0xd8] sm:$0xff]
        %v381 = vld [vmem:[%s228 + $0xe0] sm:$0xff]
        %v382 = vld [vmem:[%s228 + $0xe8] sm:$0xff]
        %v383 = vld [vmem:[%s228 + $0xf0] sm:$0xff]
        %v384 = vld [vmem:[%s228 + $0xf8] sm:$0xff]
        %v385 = vld [vmem:[%s228 + $0x100] sm:$0xff]
        %v386 = vld [vmem:[%s228 + $0x108] sm:$0xff]
        %v387 = vld [vmem:[%s228 + $0x110] sm:$0xff]
        %v388 = vld [vmem:[%s228 + $0x118] sm:$0xff]
        %vm389 = vcmask 261120
        %v391 = vsel %vm389, %v337, 0
        %v394 = vsel %vm389, %v340, 0
        %v397 = vsel %vm389, %v343, 0
        %v400 = vsel %vm389, %v346, 0
        %v403 = vsel %vm389, %v349, 0
        %v406 = vsel %vm389, %v352, 0
        %408 = vmatprep.subr.mxu0 0.0
        %409 = vmatpush1.msra.mxu0 %v368
        %410 = vmatprep.subr.mxu0 0.0
        %411 = vmatpush1.msra.mxu0 %v367
        %412 = vmatprep.subr.mxu0 0.0
        %413 = vmatpush1.msra.mxu0 %v366
        %414 = vmatprep.subr.mxu0 0.0
        %415 = vmatpush1.msra.mxu0 %v365
        %416 = vmatprep.subr.mxu0 0.0
        %417 = vmatpush1.msra.mxu0 %v364
        %418 = vmatprep.subr.mxu0 0.0
        %419 = vmatpush1.msra.mxu0 %v363
        %420 = vmatprep.subr.mxu0 0.0
        %421 = vmatpush1.msra.mxu0 %v362
        %422 = vmatprep.subr.mxu0 0.0
        %423 = vmatpush1.msra.mxu0 %v361
        %424 = vmatprep.subr.mxu0 0.0
        %425 = vmatpush1.msra.mxu0 %v360
        %426 = vmatprep.subr.mxu0 0.0
        %427 = vmatpush1.msra.mxu0 %v359
        %428 = vmatprep.subr.mxu0 0.0
        %429 = vmatpush1.msra.mxu0 %v358
        %430 = vmatprep.subr.mxu0 0.0
        %431 = vmatpush1.msra.mxu0 %v357
        %432 = vmatprep.subr.mxu0 0.0
        %433 = vmatpush1.msra.mxu0 %v356
        %434 = vmatprep.subr.mxu0 0.0
        %435 = vmatpush1.msra.mxu0 %v355
        %436 = vmatprep.subr.mxu0 0.0
        %437 = vmatpush1.msra.mxu0 %v354
        %438 = vmatprep.subr.mxu0 0.0
        %439 = vmatpush1.msra.mxu0 %v353
        %440 = vmatprep.subr.mxu0 0.0
        %441 = vmatpush2.msra.mxu0 %v384
        %442 = vmatprep.subr.mxu0 0.0
        %443 = vmatpush2.msra.mxu0 %v383
        %444 = vmatprep.subr.mxu0 0.0
        %445 = vmatpush2.msra.mxu0 %v382
        %446 = vmatprep.subr.mxu0 0.0
        %447 = vmatpush2.msra.mxu0 %v381
        %448 = vmatprep.subr.mxu0 0.0
        %449 = vmatpush2.msra.mxu0 %v380
        %450 = vmatprep.subr.mxu0 0.0
        %451 = vmatpush2.msra.mxu0 %v379
        %452 = vmatprep.subr.mxu0 0.0
        %453 = vmatpush2.msra.mxu0 %v378
        %454 = vmatprep.subr.mxu0 0.0
        %455 = vmatpush2.msra.mxu0 %v377
        %456 = vmatprep.subr.mxu0 0.0
        %457 = vmatpush2.msra.mxu0 %v376
        %458 = vmatprep.subr.mxu0 0.0
        %459 = vmatpush2.msra.mxu0 %v375
        %460 = vmatprep.subr.mxu0 0.0
        %461 = vmatpush2.msra.mxu0 %v374
        %462 = vmatprep.subr.mxu0 0.0
        %463 = vmatpush2.msra.mxu0 %v373
        %464 = vmatprep.subr.mxu0 0.0
        %465 = vmatpush2.msra.mxu0 %v372
        %466 = vmatprep.subr.mxu0 0.0
        %467 = vmatpush2.msra.mxu0 %v371
        %468 = vmatprep.subr.mxu0 0.0
        %469 = vmatpush2.msra.mxu0 %v370
        %470 = vmatprep.subr.mxu0 0.0
        %471 = vmatpush2.msra.mxu0 %v369
        %472 = vmatprep.mubr.f32.mxu0 %v336
        %473 = vmatmul.mubr.f32.gmra.mxu0 %v335
        %v474 = vpop.f32.mrf.mxu0
        %v475 = vadd.f32 0.0, %v474
        %v476 = vpop.f32.mrf.mxu0
        %477 = vmatprep.mubr.f32.mxu0 %v339
        %478 = vmatmul.mubr.f32.gmra.mxu0 %v338
        %v479 = vpop.f32.mrf.mxu0
        %v480 = vadd.f32 0.0, %v479
        %v481 = vpop.f32.mrf.mxu0
        %482 = vmatprep.mubr.f32.mxu0 %v342
        %483 = vmatmul.mubr.f32.gmra.mxu0 %v341
        %v484 = vpop.f32.mrf.mxu0
        %v485 = vadd.f32 0.0, %v484
        %v486 = vpop.f32.mrf.mxu0
        %487 = vmatprep.mubr.f32.mxu0 %v345
        %488 = vmatmul.mubr.f32.gmra.mxu0 %v344
        %v489 = vpop.f32.mrf.mxu0
        %v490 = vadd.f32 0.0, %v489
        %v491 = vpop.f32.mrf.mxu0
        %492 = vmatprep.mubr.f32.mxu0 %v348
        %493 = vmatmul.mubr.f32.gmra.mxu0 %v347
        %v494 = vpop.f32.mrf.mxu0
        %v495 = vadd.f32 0.0, %v494
        %v496 = vpop.f32.mrf.mxu0
        %497 = vmatprep.mubr.f32.mxu0 %v351
        %498 = vmatmul.mubr.f32.gmra.mxu0 %v350
        %v499 = vpop.f32.mrf.mxu0
        %v500 = vadd.f32 0.0, %v499
        %v501 = vpop.f32.mrf.mxu0
        %502 = vdwg.mxu0
        %503 = vmatprep.subr.mxu0 0.0
        %504 = vmatpush1.msra.mxu0 0.0
        %505 = vmatprep.subr.mxu0 0.0
        %506 = vmatpush1.msra.mxu0 0.0
        %507 = vmatprep.subr.mxu0 0.0
        %508 = vmatpush1.msra.mxu0 0.0
        %509 = vmatprep.subr.mxu0 0.0
        %510 = vmatpush1.msra.mxu0 0.0
        %511 = vmatprep.subr.mxu0 0.0
        %512 = vmatpush1.msra.mxu0 0.0
        %513 = vmatprep.subr.mxu0 0.0
        %514 = vmatpush1.msra.mxu0 0.0
        %515 = vmatprep.subr.mxu0 0.0
        %516 = vmatpush1.msra.mxu0 0.0
        %517 = vmatprep.subr.mxu0 0.0
        %518 = vmatpush1.msra.mxu0 0.0
        %519 = vmatprep.subr.mxu0 0.0
        %520 = vmatpush1.msra.mxu0 0.0
        %521 = vmatprep.subr.mxu0 0.0
        %522 = vmatpush1.msra.mxu0 0.0
        %523 = vmatprep.subr.mxu0 0.0
        %524 = vmatpush1.msra.mxu0 0.0
        %525 = vmatprep.subr.mxu0 0.0
        %526 = vmatpush1.msra.mxu0 0.0
        %527 = vmatprep.subr.mxu0 0.0
        %528 = vmatpush1.msra.mxu0 %v388
        %529 = vmatprep.subr.mxu0 0.0
        %530 = vmatpush1.msra.mxu0 %v387
        %531 = vmatprep.subr.mxu0 0.0
        %532 = vmatpush1.msra.mxu0 %v386
        %533 = vmatprep.subr.mxu0 0.0
        %534 = vmatpush1.msra.mxu0 %v385
        %535 = vmatprep.subr.mxu0 0.0
        %536 = vmatpush2.msra.mxu0 0.0
        %537 = vmatprep.subr.mxu0 0.0
        %538 = vmatpush2.msra.mxu0 0.0
        %539 = vmatprep.subr.mxu0 0.0
        %540 = vmatpush2.msra.mxu0 0.0
        %541 = vmatprep.subr.mxu0 0.0
        %542 = vmatpush2.msra.mxu0 0.0
        %543 = vmatprep.subr.mxu0 0.0
        %544 = vmatpush2.msra.mxu0 0.0
        %545 = vmatprep.subr.mxu0 0.0
        %546 = vmatpush2.msra.mxu0 0.0
        %547 = vmatprep.subr.mxu0 0.0
        %548 = vmatpush2.msra.mxu0 0.0
        %549 = vmatprep.subr.mxu0 0.0
        %550 = vmatpush2.msra.mxu0 0.0
        %551 = vmatprep.subr.mxu0 0.0
        %552 = vmatpush2.msra.mxu0 0.0
        %553 = vmatprep.subr.mxu0 0.0
        %554 = vmatpush2.msra.mxu0 0.0
        %555 = vmatprep.subr.mxu0 0.0
        %556 = vmatpush2.msra.mxu0 0.0
        %557 = vmatprep.subr.mxu0 0.0
        %558 = vmatpush2.msra.mxu0 0.0
        %559 = vmatprep.subr.mxu0 0.0
        %560 = vmatpush2.msra.mxu0 0.0
        %561 = vmatprep.subr.mxu0 0.0
        %562 = vmatpush2.msra.mxu0 0.0
        %563 = vmatprep.subr.mxu0 0.0
        %564 = vmatpush2.msra.mxu0 0.0
        %565 = vmatprep.subr.mxu0 0.0
        %566 = vmatpush2.msra.mxu0 0.0
        %567 = vmatprep.mubr.f32.mxu0 0.0
        %568 = vmatmul.mubr.f32.gmra.mxu0 %v391
        %v569 = vpop.f32.mrf.mxu0
        %v570 = vadd.f32 %v475, %v569
        %v571 = vpop.f32.mrf.mxu0
        %572 = vmatprep.mubr.f32.mxu0 0.0
        %573 = vmatmul.mubr.f32.gmra.mxu0 %v394
        %v574 = vpop.f32.mrf.mxu0
        %v575 = vadd.f32 %v480, %v574
        %v576 = vpop.f32.mrf.mxu0
        %577 = vmatprep.mubr.f32.mxu0 0.0
        %578 = vmatmul.mubr.f32.gmra.mxu0 %v397
        %v579 = vpop.f32.mrf.mxu0
        %v580 = vadd.f32 %v485, %v579
        %v581 = vpop.f32.mrf.mxu0
        %582 = vmatprep.mubr.f32.mxu0 0.0
        %583 = vmatmul.mubr.f32.gmra.mxu0 %v400
        %v584 = vpop.f32.mrf.mxu0
        %v585 = vadd.f32 %v490, %v584
        %v586 = vpop.f32.mrf.mxu0
        %587 = vmatprep.mubr.f32.mxu0 0.0
        %588 = vmatmul.mubr.f32.gmra.mxu0 %v403
        %v589 = vpop.f32.mrf.mxu0
        %v590 = vadd.f32 %v495, %v589
        %v591 = vpop.f32.mrf.mxu0
        %592 = vmatprep.mubr.f32.mxu0 0.0
        %593 = vmatmul.mubr.f32.gmra.mxu0 %v406
        %v594 = vpop.f32.mrf.mxu0
        %v595 = vadd.f32 %v500, %v594
        %v596 = vpop.f32.mrf.mxu0
        %597 = vdwg.mxu0
        %598 = vst [vmem:[%s250] sm:$0xff] %v570
        %599 = vst [vmem:[%s250 + $0x8] sm:$0xff] %v575
        %600 = vst [vmem:[%s250 + $0x10] sm:$0xff] %v580
        %601 = vst [vmem:[%s250 + $0x18] sm:$0xff] %v585
        %602 = vst [vmem:[%s250 + $0x20] sm:$0xff] %v590
        %603 = vst [vmem:[%s250 + $0x28] sm:$0xff] %v595
        %s604 = sand.u32 %s127, 1
        %s605 = scalar_lea.sflag [#allocation5], %s604
        %s606 = sand.u32 %s127, 1
        %s607 = smul.addr %s606, 48
        %s608 = scalar_lea.vmem [#allocation9], %s607
        // Predicated region
        $region49: #{tpu_custom_call.1} parent=31 // pred_check
          %p609 = pneg %p137
        $region50: #{tpu_custom_call.1} parent=31 // pred_check_branch
          %611 = sbr.rel (%p609) target = $region52
        $region51: #{tpu_custom_call.1} parent=31 // pred_region
          %s612 = sadd.s32 %s25, %s26
          %s614 = ssub.s32 768, 768
          %615 = vsyncadd %s605, %s614
          %s616 = smul.addr %s24, 12
          %s617 = sadd.s32 %s612, %s616
          %s618 = smul.addr %s617, 128
          %s619 = scalar_lea.hbm %s3, %s618
          %s620 = sshll.u32 %s608, 4
          %s621 = int_to_ptr.vmem [resolvable:$true] %s620
          %626 = dma.vmem_to_hbm [thread:$0]  %s621, 768, %s619, %s605, 128, 256, 8
        $region52: #{tpu_custom_call.1} parent=31 // pred_fallthru
          _
      $region32: #{tpu_custom_call.1} parent=5 // pred_fallthru
        _
      %p627 = scmp.le.s32.totalorder 2, %s14
      // Predicated region
      $region53: #{tpu_custom_call.1} parent=5 // pred_check
        %p628 = pneg %p627
      $region54: #{tpu_custom_call.1} parent=5 // pred_check_branch
        %630 = sbr.rel (%p628) target = $region56
      $region55: #{tpu_custom_call.1} parent=5 // pred_region
        %s631 = ssub.s32 %s14, 2
        // Predicated region
        $region57: #{tpu_custom_call.1} parent=55 // pred_check
          %p632 = pneg %p143
        $region58: #{tpu_custom_call.1} parent=55 // pred_check_branch
          %634 = sbr.rel (%p632) target = $region60
        $region59: #{tpu_custom_call.1} parent=55 // pred_region
          %s635 = sand.u32 %s128, 1
          %s636 = scalar_lea.sflag [#allocation5], %s635
          %s637 = sand.u32 %s128, 1
          %s638 = smul.addr %s637, 48
          %s639 = scalar_lea.vmem [#allocation9], %s638
          %640 = dma.done %s636, 768
        $region60: #{tpu_custom_call.1} parent=55 // pred_fallthru
          _
      $region56: #{tpu_custom_call.1} parent=5 // pred_fallthru
        _
    $region6: #{tpu_custom_call.1} parent=1 // loop_footer
      %s18 = sadd.s32 1, %s14
    $region7: #{tpu_custom_call.1} parent=1 // loop_footer_branch
      %13 = sbr.rel target = $region3
    $region8: #{tpu_custom_call.1} parent=1 // loop_exit
      _
    %641 = vsyncpa [#allocation4], 1
    %s642 = scalar_lea.sflag [#allocation4], 1
    %643 = vsyncpa %s642, 1
    %644 = vsyncpa [#allocation7], 1
    %645 = vsyncpa [#allocation5], 1
    %s646 = scalar_lea.sflag [#allocation5], 1
    %647 = vsyncpa %s646, 1

</llo_original>
